<compile_context>
chip_gen: v7x
topology: tpu7x:2x2x1
jax: 0.10.0
libtpu: 0.0.40
codegen_flags: <defaults>
</compile_context>

<pallas_src>
import itertools
from collections import defaultdict

import numpy as np
import jax
import jax.numpy as jnp
from jax import lax
from jax.experimental import pallas as pl
from jax.experimental.pallas import tpu as pltpu

NUM_CLASSES = 9
COEF_CLASS = 2.0
COEF_BOXES = 5.0
COEF_GIOU = 2.0
ALPHA_FOCAL = 0.25          # == matcher alpha; gamma == 2 for both -> terms reusable
CP = 128                    # lane-dense padded class width (logits / one-hot matmul K)
GP = 128                    # lane-dense padded gt-column width
EPS = 1e-7
NEG_PAD_LOGIT = -30.0       # padding logit: sigmoid ~ 0, focal neg term ~ 0


def _cxcywh_to_xyxy_np(b):
    cx, cy, w, h = b[:, 0], b[:, 1], b[:, 2], b[:, 3]
    return np.stack([cx - 0.5 * w, cy - 0.5 * h, cx + 0.5 * w, cy + 0.5 * h],
                    axis=1).astype(np.float32)


def _pick_row_tile(r):
    # >= 2 grid steps when possible (v7x megacore), 256-row tiles at large R.
    if r >= 1024:
        return 256
    half = (r + 1) // 2
    return max(8, ((half + 7) // 8) * 8)


# ---------------------------------------------------------------------------
# Kernel 1: matcher cost + focal-loss building blocks, ALL layers flattened.
#   grid = (Rp // row_tile,), each step handles one row tile of the flattened
#   [Rp, 128] logits / [Rp, 8] (cxcywh + xyxy) pred boxes.
#   Outputs (all [Rp, 128], lane-dense unmasked stores):
#     cost_ref  : combined matcher cost (cols >= G are padding garbage)
#     class_ref : focal (pos - neg) gathered per gt column (cols >= G are 0)
#     neg_ref   : per-row sum over real classes of the all-negatives focal term
#                 (broadcast to all lanes; host/device reads lane 0)
# ---------------------------------------------------------------------------
def _matcher_cost_kernel(logits_ref, pboxes_ref, sel_ref, gtb_ref,
                         cost_ref, class_ref, neg_ref):
    x = logits_ref[...]                            # [T, CP] f32, pad lanes = -30
    ax = jnp.abs(x)
    e = jnp.exp(-ax)
    one_p_e = 1.0 + e
    inv = pl.reciprocal(one_p_e, approx=True)      # EUP slot, no f32 divide
    lg = jnp.log(one_p_e)                          # log1p(exp(-|x|)), e <= 1
    sp_pos = jnp.maximum(x, 0.0) + lg              # softplus(x)  = -log(1 - p)
    sp_neg = jnp.maximum(-x, 0.0) + lg             # softplus(-x) = -log(p)
    prob = jnp.where(x >= 0.0, 1.0, e) * inv       # sigmoid(x)
    one_m = 1.0 - prob
    neg = (1.0 - ALPHA_FOCAL) * (prob * prob) * sp_pos   # focal term for t = 0
    pos = ALPHA_FOCAL * (one_m * one_m) * sp_neg         # focal term for t = 1
    pm = pos - neg                                       # per-class matcher class cost

    # per-row sum of the all-negatives focal term (real classes only).
    lane = lax.broadcasted_iota(jnp.int32, x.shape, 1)
    neg_row = jnp.sum(jnp.where(lane < NUM_CLASSES, neg, 0.0),
                      axis=1, keepdims=True)             # [T, 1]
    neg_ref[...] = jnp.broadcast_to(neg_row, neg_ref.shape)

    # One-hot gather of pm columns by gt class id on the (otherwise idle) MXU.
    # sel is an exact 0/1 selection matrix; f32 matmul keeps the loss-path
    # class cost numerically faithful.
    cls = jnp.dot(pm, sel_ref[...], preferred_element_type=jnp.float32)  # [T, GP]
    class_ref[...] = cls

    pb = pboxes_ref[...]                           # [T, 8]: cx,cy,w,h,x1,y1,x2,y2
    gt = gtb_ref[...]                              # [8, GP]: cx,cy,w,h,x1,y1,x2,y2
    pcx, pcy, pw, ph = pb[:, 0:1], pb[:, 1:2], pb[:, 2:3], pb[:, 3:4]
    px1, py1, px2, py2 = pb[:, 4:5], pb[:, 5:6], pb[:, 6:7], pb[:, 7:8]
    gcx, gcy, gw, gh = gt[0:1, :], gt[1:2, :], gt[2:3, :], gt[3:4, :]
    gx1, gy1, gx2, gy2 = gt[4:5, :], gt[5:6, :], gt[6:7, :], gt[7:8, :]

    # L1 cdist on cxcywh coords.
    cost_boxes = (jnp.abs(pcx - gcx) + jnp.abs(pcy - gcy)
                  + jnp.abs(pw - gw) + jnp.abs(ph - gh))                 # [T, GP]

    # pairwise GIoU on xyxy (approx reciprocals are fine on the matcher path).
    area_p = pw * ph                               # [T, 1]
    area_g = gw * gh                               # [1, GP]
    iw = jnp.maximum(jnp.minimum(px2, gx2) - jnp.maximum(px1, gx1), 0.0)
    ih = jnp.maximum(jnp.minimum(py2, gy2) - jnp.maximum(py1, gy1), 0.0)
    inter = iw * ih                                # [T, GP]
    union = area_p + area_g - inter
    iou = inter * pl.reciprocal(union + EPS, approx=True)
    ew = jnp.maximum(px2, gx2) - jnp.minimum(px1, gx1)
    eh = jnp.maximum(py2, gy2) - jnp.minimum(py1, gy1)
    earea = ew * eh
    giou = iou - (earea - union) * pl.reciprocal(earea + EPS, approx=True)

    cost_ref[...] = (COEF_BOXES * cost_boxes + COEF_CLASS * cls
                     + COEF_GIOU * (-giou))


def matcher_cost_all(logits_pad, pboxes_pad, sel, gtb, row_tile):
    Rp, cp = logits_pad.shape
    gp = sel.shape[1]
    out_sds = jax.ShapeDtypeStruct((Rp, gp), jnp.float32)
    return pl.pallas_call(
        _matcher_cost_kernel,
        out_shape=(out_sds, out_sds, out_sds),
        grid=(Rp // row_tile,),
        in_specs=[
            pl.BlockSpec((row_tile, cp), lambda r: (r, 0)),
            pl.BlockSpec((row_tile, 8), lambda r: (r, 0)),
            pl.BlockSpec((cp, gp), lambda r: (0, 0)),
            pl.BlockSpec((8, gp), lambda r: (0, 0)),
        ],
        out_specs=(
            pl.BlockSpec((row_tile, gp), lambda r: (r, 0)),
            pl.BlockSpec((row_tile, gp), lambda r: (r, 0)),
            pl.BlockSpec((row_tile, gp), lambda r: (r, 0)),
        ),
        compiler_params=pltpu.CompilerParams(
            dimension_semantics=("parallel",),
            vmem_limit_bytes=48 * 1024 * 1024),   # fits v7x's 64 MiB VMEM
    )(logits_pad, pboxes_pad, sel, gtb)


# ---------------------------------------------------------------------------
# Kernel 2: matched-pair box losses, ALL layers packed into one lane axis.
#   pairs : [16, MTP] coord-major, rows 0-7  = src (cx,cy,w,h,x1,y1,x2,y2)
#                                 rows 8-15 = tgt (cx,cy,w,h,x1,y1,x2,y2)
#   out   : [8, MTP], row 0 = per-pair L1 (sum over 4 coords),
#                     row 1 = per-pair (1 - GIoU). Host sums per-layer lanes.
#   Exact divides on this loss path (review correctness note).
# ---------------------------------------------------------------------------
def _matched_box_loss_kernel(pairs_ref, out_ref):
    p = pairs_ref[...]                             # [16, MTP]
    scx, scy, sw, sh = p[0:1], p[1:2], p[2:3], p[3:4]
    sx1, sy1, sx2, sy2 = p[4:5], p[5:6], p[6:7], p[7:8]
    tcx, tcy, tw, th = p[8:9], p[9:10], p[10:11], p[11:12]
    tx1, ty1, tx2, ty2 = p[12:13], p[13:14], p[14:15], p[15:16]

    l1 = (jnp.abs(scx - tcx) + jnp.abs(scy - tcy)
          + jnp.abs(sw - tw) + jnp.abs(sh - th))   # [1, MTP]

    area_s = sw * sh
    area_t = tw * th
    iw = jnp.maximum(jnp.minimum(sx2, tx2) - jnp.maximum(sx1, tx1), 0.0)
    ih = jnp.maximum(jnp.minimum(sy2, ty2) - jnp.maximum(sy1, ty1), 0.0)
    inter = iw * ih
    union = area_s + area_t - inter
    iou = inter / jnp.maximum(union, EPS)
    ew = jnp.maximum(sx2, tx2) - jnp.minimum(sx1, tx1)
    eh = jnp.maximum(sy2, ty2) - jnp.minimum(sy1, ty1)
    earea = ew * eh
    giou = iou - (earea - union) / jnp.maximum(earea, EPS)
    one_m_giou = 1.0 - giou                        # [1, MTP]

    row = lax.broadcasted_iota(jnp.int32, out_ref.shape, 0)
    out_ref[...] = jnp.where(row == 0, l1,
                             jnp.where(row == 1, one_m_giou, 0.0))


def matched_box_losses(pairs):
    mtp = pairs.shape[1]
    return pl.pallas_call(
        _matched_box_loss_kernel,
        out_shape=jax.ShapeDtypeStruct((8, mtp), jnp.float32),
    )(pairs)


# ---------------------------------------------------------------------------
# Host-side exact linear sum assignment (small sizes -> brute force is exact)
# TODO(synk): replace with scipy.optimize.linear_sum_assignment for real DETR
#             sizes (Q=100+); brute force is only viable for the toy Q=8 case.
# ---------------------------------------------------------------------------
def linear_sum_assignment_bruteforce(cost):
    Q, G = cost.shape
    best_rows, best_c = None, np.inf
    for perm in itertools.permutations(range(Q), G):
        c = sum(cost[perm[j], j] for j in range(G))
        if c < best_c:
            best_c, best_rows = c, perm
    rows = np.asarray(best_rows, dtype=np.int64)
    cols = np.arange(G, dtype=np.int64)
    order = np.argsort(rows)
    return rows[order], cols[order]


# ---------------------------------------------------------------------------
# SetCriterion forward: 2 Pallas kernel launches + 2 device->host syncs.
# ---------------------------------------------------------------------------
class SetCriterionPallas:
    def __init__(self, num_classes=NUM_CLASSES, coef_class=COEF_CLASS,
                 coef_boxes=COEF_BOXES, coef_giou=COEF_GIOU):
        self.num_classes = num_classes
        self.coef_class = coef_class
        self.coef_boxes = coef_boxes
        self.coef_giou = coef_giou
        self.logits_sum = np.zeros(num_classes, dtype=np.float32)
        self.logits_count = np.zeros(num_classes, dtype=np.int32)

    def clear_positive_logits(self):
        self.logits_sum[:] = 0.0
        self.logits_count[:] = 0

    def forward(self, out, annotations):
        logits_all = out['logits_all']     # [L, B, Q, C]
        boxes_all = out['boxes_all']       # [L, B, Q, 4]
        L, B, Q, C = logits_all.shape
        N = B * Q
        R = L * N
        assert C <= CP

        sizes = [len(a['boxes']) for a in annotations]
        G = int(sum(sizes))
        assert 0 < G <= GP
        col_off = np.cumsum([0] + sizes[:-1])
        num_boxes = float(sum(len(a['labels']) for a in annotations))
        num_boxes = max(num_boxes, 1.0)    # world_size == 1 (no all_reduce)

        gt_labels_cat = np.concatenate(
            [np.asarray(a['labels']) for a in annotations]).astype(np.int64)
        gt_boxes_cat = np.concatenate(
            [np.asarray(a['boxes']) for a in annotations]).astype(np.float32)

        # tiny host-built operands: one-hot selection matrix + transposed gt boxes
        sel = np.zeros((CP, GP), np.float32)
        sel[gt_labels_cat, np.arange(G)] = 1.0
        gtb = np.zeros((8, GP), np.float32)
        gtb[0:4, :G] = gt_boxes_cat.T
        gtb[4:8, :G] = _cxcywh_to_xyxy_np(gt_boxes_cat).T

        # device-side flatten + pad (plain XLA ops before the kernel)
        row_tile = _pick_row_tile(R)
        Rp = ((R + row_tile - 1) // row_tile) * row_tile
        logits_flat = jnp.reshape(logits_all, (R, C)).astype(jnp.float32)
        logits_pad = jnp.full((Rp, CP), NEG_PAD_LOGIT, jnp.float32)
        logits_pad = logits_pad.at[:R, :C].set(logits_flat)
        b4 = jnp.reshape(boxes_all, (R, 4)).astype(jnp.float32)
        xyxy = jnp.concatenate([b4[:, :2] - 0.5 * b4[:, 2:],
                                b4[:, :2] + 0.5 * b4[:, 2:]], axis=1)
        pboxes_pad = jnp.zeros((Rp, 8), jnp.float32)
        pboxes_pad = pboxes_pad.at[:R].set(jnp.concatenate([b4, xyxy], axis=1))

        # ---- Kernel 1: cost + focal pieces for ALL layers (one launch) ----
        cost_d, cls_d, neg_d = matcher_cost_all(
            logits_pad, pboxes_pad, jnp.asarray(sel), jnp.asarray(gtb), row_tile)
        neg_per_layer = jnp.sum(jnp.reshape(neg_d[:R, 0], (L, N)), axis=1)  # [L]

        # ONE batched device->host transfer (valid slices only)
        cost_np, cls_np, neg_np, boxes_np, logits_last_np = jax.device_get(
            (cost_d[:R, :G], cls_d[:R, :G], neg_per_layer,
             boxes_all, logits_all[L - 1]))
        cost_np = cost_np.reshape(L, B, Q, G)
        cls_np = cls_np.reshape(L, B, Q, G)
        boxes_np = np.asarray(boxes_np)
        logits_last_np = np.asarray(logits_last_np)

        # ---- Hungarian per (layer, image) on host ----
        all_indices = []
        for i in range(L):
            indices = []
            for b, s in enumerate(sizes):
                c = cost_np[i, b, :, col_off[b]:col_off[b] + s]
                indices.append(linear_sum_assignment_bruteforce(c))
            all_indices.append(indices)

        # ---- per-layer focal class loss: reuse the matcher's focal terms ----
        # focal_sum = sum_all(neg) + sum_matched(pos - neg)
        loss_class_layers = []
        for i in range(L):
            matched = 0.0
            for b, (src, tgt) in enumerate(all_indices[i]):
                matched += float(cls_np[i, b, src, col_off[b] + tgt].sum())
            loss_class_layers.append((float(neg_np[i]) + matched) / num_boxes)

        # ---- matched box pairs, coord-major, all layers on one lane axis ----
        MT = L * G
        MTP = max(128, ((MT + 127) // 128) * 128)
        pairs = np.zeros((16, MTP), np.float32)
        for i in range(L):
            src_b, tgt_b = [], []
            for b, (src, tgt) in enumerate(all_indices[i]):
                src_b.append(boxes_np[i, b, src])
                tgt_b.append(np.asarray(annotations[b]['boxes'])[tgt].astype(np.float32))
            sb = np.concatenate(src_b, axis=0)           # [G, 4] cxcywh
            tb = np.concatenate(tgt_b, axis=0)           # [G, 4] cxcywh
            base = i * G
            pairs[0:4, base:base + G] = sb.T
            pairs[4:8, base:base + G] = _cxcywh_to_xyxy_np(sb).T
            pairs[8:12, base:base + G] = tb.T
            pairs[12:16, base:base + G] = _cxcywh_to_xyxy_np(tb).T

        # ---- Kernel 2: matched L1 + (1 - GIoU) per pair (one launch) ----
        box_np = jax.device_get(matched_box_losses(jnp.asarray(pairs)))  # [8, MTP]

        total_loss = 0.0
        loss_dict = defaultdict(float)
        for i in range(L):
            seg = slice(i * G, i * G + G)
            lc = loss_class_layers[i]
            lb = float(box_np[0, seg].sum()) / num_boxes
            lgi = float(box_np[1, seg].sum()) / num_boxes
            loss_dict['loss_class'] += lc
            loss_dict['loss_boxes'] += lb
            loss_dict['loss_giou'] += lgi
            total_loss += (self.coef_class * lc + self.coef_boxes * lb
                           + self.coef_giou * lgi)

        # record_positive_logits (stateful host-side buffers, last layer only)
        batch_idx = np.concatenate(
            [np.full_like(src, b) for b, (src, _) in enumerate(all_indices[L - 1])])
        src_idx = np.concatenate([src for src, _ in all_indices[L - 1]])
        probs = 1.0 / (1.0 + np.exp(-logits_last_np[batch_idx, src_idx]))
        labels = probs.argmax(axis=1)
        maxvals = probs.max(axis=1)
        for lab, v in zip(labels, maxvals):
            self.logits_sum[lab] += v
            self.logits_count[lab] += 1

        total_loss /= L
        for k in list(loss_dict.keys()):
            loss_dict[k] /= L
        return total_loss, dict(loss_dict)


# ---------------------------------------------------------------------------
if __name__ == "__main__":
    key = jax.random.PRNGKey(0)
    L, B, Q, C = 2, 2, 8, NUM_CLASSES

    k1, k2, k3, k4 = jax.random.split(key, 4)
    logits_all = jax.random.normal(k1, (L, B, Q, C), dtype=jnp.float32)
    pb_cxcy = jax.random.uniform(k2, (L, B, Q, 2), minval=0.1, maxval=0.9)
    pb_wh = jax.random.uniform(k3, (L, B, Q, 2), minval=0.05, maxval=0.4)
    boxes_all = jnp.concatenate([pb_cxcy, pb_wh], axis=-1).astype(jnp.float32)

    # ground-truth annotations (3 boxes in image 0, 2 boxes in image 1)
    n_gt = [3, 2]
    annotations = []
    for b, n in enumerate(n_gt):
        ka, kb, kc = jax.random.split(jax.random.fold_in(k4, b), 3)
        labels = np.asarray(jax.random.randint(ka, (n,), 0, NUM_CLASSES),
                            dtype=np.int64)
        cxcy = np.asarray(jax.random.uniform(kb, (n, 2), minval=0.3, maxval=0.7))
        wh = np.asarray(jax.random.uniform(kc, (n, 2), minval=0.05, maxval=0.25))
        boxes = np.concatenate([cxcy, wh], axis=-1).astype(np.float32)
        annotations.append({'labels': labels, 'boxes': boxes})

    criterion = SetCriterionPallas()
    out = {'logits_all': logits_all, 'boxes_all': boxes_all}
    loss, loss_dict = criterion.forward(out, annotations)

    jax.block_until_ready(jnp.asarray(loss, dtype=jnp.float32))
    assert np.isfinite(loss)
    assert all(np.isfinite(v) for v in loss_dict.values())
    print("KERNEL_OK")
</pallas_src>

<mosaic_0001>
module attributes {stable_mosaic.version = 11 : i64} {
  func.func @_matcher_cost_kernel(%arg0: i32, %arg1: memref<16x128xf32, #tpu.memory_space<vmem>>, %arg2: memref<16x8xf32, #tpu.memory_space<vmem>>, %arg3: memref<128x128xf32, #tpu.memory_space<vmem>>, %arg4: memref<8x128xf32, #tpu.memory_space<vmem>>, %arg5: memref<16x128xf32, #tpu.memory_space<vmem>>, %arg6: memref<16x128xf32, #tpu.memory_space<vmem>>, %arg7: memref<16x128xf32, #tpu.memory_space<vmem>>) attributes {dimension_semantics = [#tpu.dimension_semantics<parallel>], iteration_bounds = array<i64: 2>, scalar_prefetch = 0 : i64, scratch_operands = 0 : i64, tpu.core_type = #tpu.core_type<tc>, window_params = [{transform_indices = @transform_0, window_bounds = array<i64: 16, 128>}, {transform_indices = @transform_1, window_bounds = array<i64: 16, 8>}, {pipeline_mode = #tpu.pipeline_mode<synchronous>, transform_indices = @transform_2, window_bounds = array<i64: 128, 128>}, {pipeline_mode = #tpu.pipeline_mode<synchronous>, transform_indices = @transform_3, window_bounds = array<i64: 8, 128>}, {transform_indices = @transform_4, window_bounds = array<i64: 16, 128>}, {transform_indices = @transform_5, window_bounds = array<i64: 16, 128>}, {transform_indices = @transform_6, window_bounds = array<i64: 16, 128>}]} {
    %c0 = arith.constant 0 : index
    %c0_0 = arith.constant 0 : index
    %0 = vector.load %arg1[%c0, %c0_0] : memref<16x128xf32, #tpu.memory_space<vmem>>, vector<16x128xf32>
    %1 = math.absf %0 : vector<16x128xf32>
    %cst = arith.constant 0.000000e+00 : f32
    %2 = vector.broadcast %cst : f32 to vector<16x128xf32>
    %3 = arith.subf %2, %1 : vector<16x128xf32>
    %4 = math.exp %3 : vector<16x128xf32>
    %cst_1 = arith.constant 1.000000e+00 : f32
    %5 = vector.broadcast %cst_1 : f32 to vector<16x128xf32>
    %6 = arith.addf %5, %4 : vector<16x128xf32>
    %7 = tpu.reciprocal %6 {approx = true} : vector<16x128xf32> -> vector<16x128xf32>
    %8 = math.log %6 : vector<16x128xf32>
    %cst_2 = arith.constant 0.000000e+00 : f32
    %9 = vector.broadcast %cst_2 : f32 to vector<16x128xf32>
    %10 = arith.maximumf %0, %9 : vector<16x128xf32>
    %11 = arith.addf %10, %8 : vector<16x128xf32>
    %cst_3 = arith.constant 0.000000e+00 : f32
    %12 = vector.broadcast %cst_3 : f32 to vector<16x128xf32>
    %13 = arith.subf %12, %0 : vector<16x128xf32>
    %cst_4 = arith.constant 0.000000e+00 : f32
    %14 = vector.broadcast %cst_4 : f32 to vector<16x128xf32>
    %15 = arith.maximumf %13, %14 : vector<16x128xf32>
    %16 = arith.addf %15, %8 : vector<16x128xf32>
    %cst_5 = arith.constant 0.000000e+00 : f32
    %17 = vector.broadcast %cst_5 : f32 to vector<16x128xf32>
    %18 = arith.cmpf oge, %0, %17 : vector<16x128xf32>
    %cst_6 = arith.constant 1.000000e+00 : f32
    %19 = vector.broadcast %cst_6 : f32 to vector<16x128xf32>
    %20 = arith.select %18, %19, %4 : vector<16x128xi1>, vector<16x128xf32>
    %21 = arith.mulf %20, %7 : vector<16x128xf32>
    %cst_7 = arith.constant 1.000000e+00 : f32
    %22 = vector.broadcast %cst_7 : f32 to vector<16x128xf32>
    %23 = arith.subf %22, %21 : vector<16x128xf32>
    %24 = arith.mulf %21, %21 : vector<16x128xf32>
    %cst_8 = arith.constant 7.500000e-01 : f32
    %25 = vector.broadcast %cst_8 : f32 to vector<16x128xf32>
    %26 = arith.mulf %25, %24 : vector<16x128xf32>
    %27 = arith.mulf %26, %11 : vector<16x128xf32>
    %28 = arith.mulf %23, %23 : vector<16x128xf32>
    %cst_9 = arith.constant 2.500000e-01 : f32
    %29 = vector.broadcast %cst_9 : f32 to vector<16x128xf32>
    %30 = arith.mulf %29, %28 : vector<16x128xf32>
    %31 = arith.mulf %30, %16 : vector<16x128xf32>
    %32 = arith.subf %31, %27 : vector<16x128xf32>
    %33 = tpu.iota {dimensions = array<i32: 1>} : vector<16x128xi32>
    %c9_i32 = arith.constant 9 : i32
    %34 = vector.broadcast %c9_i32 : i32 to vector<16x128xi32>
    %35 = arith.cmpi slt, %33, %34 : vector<16x128xi32>
    %cst_10 = arith.constant 0.000000e+00 : f32
    %36 = vector.broadcast %cst_10 : f32 to vector<16x128xf32>
    %37 = arith.select %35, %27, %36 : vector<16x128xi1>, vector<16x128xf32>
    %cst_11 = arith.constant dense<0.000000e+00> : vector<16xf32>
    %38 = vector.multi_reduction <add>, %37, %cst_11 [1] : vector<16x128xf32> to vector<16xf32>
    %39 = vector.shape_cast %38 : vector<16xf32> to vector<16x1xf32>
    %40 = vector.shape_cast %39 : vector<16x1xf32> to vector<16x1xf32>
    %41 = vector.broadcast %40 : vector<16x1xf32> to vector<16x128xf32>
    %c0_12 = arith.constant 0 : index
    %c0_13 = arith.constant 0 : index
    %42 = vector.load %arg7[%c0_12, %c0_13] : memref<16x128xf32, #tpu.memory_space<vmem>>, vector<16x128xf32>
    tpu.vector_store %arg7[%c0_12, %c0_13], %41 {strides = array<i32>} : memref<16x128xf32, #tpu.memory_space<vmem>>, vector<16x128xf32>,
    %c0_14 = arith.constant 0 : index
    %c0_15 = arith.constant 0 : index
    %43 = vector.load %arg3[%c0_14, %c0_15] : memref<128x128xf32, #tpu.memory_space<vmem>>, vector<128x128xf32>
    %cst_16 = arith.constant dense<0.000000e+00> : vector<16x128xf32>
    %44 = tpu.matmul %32, %43, %cst_16 {dimension_numbers = #tpu.dot_dimension_numbers<[1], [0], [0], [1], [0, 0, 1, 1], [], []>} : vector<16x128xf32>, vector<128x128xf32>, vector<16x128xf32> -> vector<16x128xf32>
    %c0_17 = arith.constant 0 : index
    %c0_18 = arith.constant 0 : index
    %45 = vector.load %arg6[%c0_17, %c0_18] : memref<16x128xf32, #tpu.memory_space<vmem>>, vector<16x128xf32>
    tpu.vector_store %arg6[%c0_17, %c0_18], %44 {strides = array<i32>} : memref<16x128xf32, #tpu.memory_space<vmem>>, vector<16x128xf32>,
    %c0_19 = arith.constant 0 : index
    %c0_20 = arith.constant 0 : index
    %46 = vector.load %arg2[%c0_19, %c0_20] : memref<16x8xf32, #tpu.memory_space<vmem>>, vector<16x8xf32>
    %c0_21 = arith.constant 0 : index
    %c0_22 = arith.constant 0 : index
    %47 = vector.load %arg4[%c0_21, %c0_22] : memref<8x128xf32, #tpu.memory_space<vmem>>, vector<8x128xf32>
    %48 = vector.extract_strided_slice %46 {offsets = [0, 0], sizes = [16, 1], strides = [1, 1]} : vector<16x8xf32> to vector<16x1xf32>
    %49 = vector.extract_strided_slice %46 {offsets = [0, 1], sizes = [16, 1], strides = [1, 1]} : vector<16x8xf32> to vector<16x1xf32>
    %50 = vector.extract_strided_slice %46 {offsets = [0, 2], sizes = [16, 1], strides = [1, 1]} : vector<16x8xf32> to vector<16x1xf32>
    %51 = vector.extract_strided_slice %46 {offsets = [0, 3], sizes = [16, 1], strides = [1, 1]} : vector<16x8xf32> to vector<16x1xf32>
    %52 = vector.extract_strided_slice %46 {offsets = [0, 4], sizes = [16, 1], strides = [1, 1]} : vector<16x8xf32> to vector<16x1xf32>
    %53 = vector.extract_strided_slice %46 {offsets = [0, 5], sizes = [16, 1], strides = [1, 1]} : vector<16x8xf32> to vector<16x1xf32>
    %54 = vector.extract_strided_slice %46 {offsets = [0, 6], sizes = [16, 1], strides = [1, 1]} : vector<16x8xf32> to vector<16x1xf32>
    %55 = vector.extract_strided_slice %46 {offsets = [0, 7], sizes = [16, 1], strides = [1, 1]} : vector<16x8xf32> to vector<16x1xf32>
    %56 = vector.extract_strided_slice %47 {offsets = [0, 0], sizes = [1, 128], strides = [1, 1]} : vector<8x128xf32> to vector<1x128xf32>
    %57 = vector.extract_strided_slice %47 {offsets = [1, 0], sizes = [1, 128], strides = [1, 1]} : vector<8x128xf32> to vector<1x128xf32>
    %58 = vector.extract_strided_slice %47 {offsets = [2, 0], sizes = [1, 128], strides = [1, 1]} : vector<8x128xf32> to vector<1x128xf32>
    %59 = vector.extract_strided_slice %47 {offsets = [3, 0], sizes = [1, 128], strides = [1, 1]} : vector<8x128xf32> to vector<1x128xf32>
    %60 = vector.extract_strided_slice %47 {offsets = [4, 0], sizes = [1, 128], strides = [1, 1]} : vector<8x128xf32> to vector<1x128xf32>
    %61 = vector.extract_strided_slice %47 {offsets = [5, 0], sizes = [1, 128], strides = [1, 1]} : vector<8x128xf32> to vector<1x128xf32>
    %62 = vector.extract_strided_slice %47 {offsets = [6, 0], sizes = [1, 128], strides = [1, 1]} : vector<8x128xf32> to vector<1x128xf32>
    %63 = vector.extract_strided_slice %47 {offsets = [7, 0], sizes = [1, 128], strides = [1, 1]} : vector<8x128xf32> to vector<1x128xf32>
    %64 = vector.broadcast %48 : vector<16x1xf32> to vector<16x128xf32>
    %65 = vector.broadcast %56 : vector<1x128xf32> to vector<16x128xf32>
    %66 = arith.subf %64, %65 : vector<16x128xf32>
    %67 = math.absf %66 : vector<16x128xf32>
    %68 = vector.broadcast %49 : vector<16x1xf32> to vector<16x128xf32>
    %69 = vector.broadcast %57 : vector<1x128xf32> to vector<16x128xf32>
    %70 = arith.subf %68, %69 : vector<16x128xf32>
    %71 = math.absf %70 : vector<16x128xf32>
    %72 = arith.addf %67, %71 : vector<16x128xf32>
    %73 = vector.broadcast %50 : vector<16x1xf32> to vector<16x128xf32>
    %74 = vector.broadcast %58 : vector<1x128xf32> to vector<16x128xf32>
    %75 = arith.subf %73, %74 : vector<16x128xf32>
    %76 = math.absf %75 : vector<16x128xf32>
    %77 = arith.addf %72, %76 : vector<16x128xf32>
    %78 = vector.broadcast %51 : vector<16x1xf32> to vector<16x128xf32>
    %79 = vector.broadcast %59 : vector<1x128xf32> to vector<16x128xf32>
    %80 = arith.subf %78, %79 : vector<16x128xf32>
    %81 = math.absf %80 : vector<16x128xf32>
    %82 = arith.addf %77, %81 : vector<16x128xf32>
    %83 = arith.mulf %50, %51 : vector<16x1xf32>
    %84 = arith.mulf %58, %59 : vector<1x128xf32>
    %85 = vector.broadcast %54 : vector<16x1xf32> to vector<16x128xf32>
    %86 = vector.broadcast %62 : vector<1x128xf32> to vector<16x128xf32>
    %87 = arith.minimumf %85, %86 : vector<16x128xf32>
    %88 = vector.broadcast %52 : vector<16x1xf32> to vector<16x128xf32>
    %89 = vector.broadcast %60 : vector<1x128xf32> to vector<16x128xf32>
    %90 = arith.maximumf %88, %89 : vector<16x128xf32>
    %91 = arith.subf %87, %90 : vector<16x128xf32>
    %cst_23 = arith.constant 0.000000e+00 : f32
    %92 = vector.broadcast %cst_23 : f32 to vector<16x128xf32>
    %93 = arith.maximumf %91, %92 : vector<16x128xf32>
    %94 = vector.broadcast %55 : vector<16x1xf32> to vector<16x128xf32>
    %95 = vector.broadcast %63 : vector<1x128xf32> to vector<16x128xf32>
    %96 = arith.minimumf %94, %95 : vector<16x128xf32>
    %97 = vector.broadcast %53 : vector<16x1xf32> to vector<16x128xf32>
    %98 = vector.broadcast %61 : vector<1x128xf32> to vector<16x128xf32>
    %99 = arith.maximumf %97, %98 : vector<16x128xf32>
    %100 = arith.subf %96, %99 : vector<16x128xf32>
    %cst_24 = arith.constant 0.000000e+00 : f32
    %101 = vector.broadcast %cst_24 : f32 to vector<16x128xf32>
    %102 = arith.maximumf %100, %101 : vector<16x128xf32>
    %103 = arith.mulf %93, %102 : vector<16x128xf32>
    %104 = vector.broadcast %83 : vector<16x1xf32> to vector<16x128xf32>
    %105 = vector.broadcast %84 : vector<1x128xf32> to vector<16x128xf32>
    %106 = arith.addf %104, %105 : vector<16x128xf32>
    %107 = arith.subf %106, %103 : vector<16x128xf32>
    %cst_25 = arith.constant 1.000000e-07 : f32
    %108 = vector.broadcast %cst_25 : f32 to vector<16x128xf32>
    %109 = arith.addf %107, %108 : vector<16x128xf32>
    %110 = tpu.reciprocal %109 {approx = true} : vector<16x128xf32> -> vector<16x128xf32>
    %111 = arith.mulf %103, %110 : vector<16x128xf32>
    %112 = vector.broadcast %54 : vector<16x1xf32> to vector<16x128xf32>
    %113 = vector.broadcast %62 : vector<1x128xf32> to vector<16x128xf32>
    %114 = arith.maximumf %112, %113 : vector<16x128xf32>
    %115 = vector.broadcast %52 : vector<16x1xf32> to vector<16x128xf32>
    %116 = vector.broadcast %60 : vector<1x128xf32> to vector<16x128xf32>
    %117 = arith.minimumf %115, %116 : vector<16x128xf32>
    %118 = arith.subf %114, %117 : vector<16x128xf32>
    %119 = vector.broadcast %55 : vector<16x1xf32> to vector<16x128xf32>
    %120 = vector.broadcast %63 : vector<1x128xf32> to vector<16x128xf32>
    %121 = arith.maximumf %119, %120 : vector<16x128xf32>
    %122 = vector.broadcast %53 : vector<16x1xf32> to vector<16x128xf32>
    %123 = vector.broadcast %61 : vector<1x128xf32> to vector<16x128xf32>
    %124 = arith.minimumf %122, %123 : vector<16x128xf32>
    %125 = arith.subf %121, %124 : vector<16x128xf32>
    %126 = arith.mulf %118, %125 : vector<16x128xf32>
    %127 = arith.subf %126, %107 : vector<16x128xf32>
    %cst_26 = arith.constant 1.000000e-07 : f32
    %128 = vector.broadcast %cst_26 : f32 to vector<16x128xf32>
    %129 = arith.addf %126, %128 : vector<16x128xf32>
    %130 = tpu.reciprocal %129 {approx = true} : vector<16x128xf32> -> vector<16x128xf32>
    %131 = arith.mulf %127, %130 : vector<16x128xf32>
    %132 = arith.subf %111, %131 : vector<16x128xf32>
    %cst_27 = arith.constant 5.000000e+00 : f32
    %133 = vector.broadcast %cst_27 : f32 to vector<16x128xf32>
    %134 = arith.mulf %133, %82 : vector<16x128xf32>
    %cst_28 = arith.constant 2.000000e+00 : f32
    %135 = vector.broadcast %cst_28 : f32 to vector<16x128xf32>
    %136 = arith.mulf %135, %44 : vector<16x128xf32>
    %137 = arith.addf %134, %136 : vector<16x128xf32>
    %cst_29 = arith.constant 0.000000e+00 : f32
    %138 = vector.broadcast %cst_29 : f32 to vector<16x128xf32>
    %139 = arith.subf %138, %132 : vector<16x128xf32>
    %cst_30 = arith.constant 2.000000e+00 : f32
    %140 = vector.broadcast %cst_30 : f32 to vector<16x128xf32>
    %141 = arith.mulf %140, %139 : vector<16x128xf32>
    %142 = arith.addf %137, %141 : vector<16x128xf32>
    %c0_31 = arith.constant 0 : index
    %c0_32 = arith.constant 0 : index
    %143 = vector.load %arg5[%c0_31, %c0_32] : memref<16x128xf32, #tpu.memory_space<vmem>>, vector<16x128xf32>
    tpu.vector_store %arg5[%c0_31, %c0_32], %142 {strides = array<i32>} : memref<16x128xf32, #tpu.memory_space<vmem>>, vector<16x128xf32>,
    return
  }
  func.func @transform_0(%arg0: i32) -> (i32, i32) {
    %c0_i32 = arith.constant 0 : i32
    %c0_i32_0 = arith.constant 0 : i32
    return %arg0, %c0_i32 : i32, i32
  }
  func.func @transform_1(%arg0: i32) -> (i32, i32) {
    %c0_i32 = arith.constant 0 : i32
    %c0_i32_0 = arith.constant 0 : i32
    return %arg0, %c0_i32 : i32, i32
  }
  func.func @transform_2(%arg0: i32) -> (i32, i32) {
    %c0_i32 = arith.constant 0 : i32
    %c0_i32_0 = arith.constant 0 : i32
    %c0_i32_1 = arith.constant 0 : i32
    return %c0_i32, %c0_i32_0 : i32, i32
  }
  func.func @transform_3(%arg0: i32) -> (i32, i32) {
    %c0_i32 = arith.constant 0 : i32
    %c0_i32_0 = arith.constant 0 : i32
    %c0_i32_1 = arith.constant 0 : i32
    return %c0_i32, %c0_i32_0 : i32, i32
  }
  func.func @transform_4(%arg0: i32) -> (i32, i32) {
    %c0_i32 = arith.constant 0 : i32
    %c0_i32_0 = arith.constant 0 : i32
    return %arg0, %c0_i32 : i32, i32
  }
  func.func @transform_5(%arg0: i32) -> (i32, i32) {
    %c0_i32 = arith.constant 0 : i32
    %c0_i32_0 = arith.constant 0 : i32
    return %arg0, %c0_i32 : i32, i32
  }
  func.func @transform_6(%arg0: i32) -> (i32, i32) {
    %c0_i32 = arith.constant 0 : i32
    %c0_i32_0 = arith.constant 0 : i32
    return %arg0, %c0_i32 : i32, i32
  }
}

</mosaic_0001>

<llo_original>
// kernel: tpu_custom_call.1
$region0: #{tpu_custom_call.1}
  #allocation0 [shape = 'u32[]', space=smem, size = 0x4, offset = 0x4, fixed_abs, tag = 'smem constant byte address 0x4 - core index']
  #allocation1 [shape = 'u32[144,128]{1,0:T(1,128)}', space=vmem, size = 0x12000, scoped, tag = 'internal scratch']
  %s0 = inlined_call_operand.vmem [shape: f32[32,128], index: 0, kind: input, shape index: {}]
  %s1 = inlined_call_operand.vmem [shape: f32[32,8], index: 1, kind: input, shape index: {}]
  %s2 = inlined_call_operand.hbm [shape: f32[128,128], index: 2, kind: input, shape index: {}]
  %s3 = inlined_call_operand.vmem [shape: f32[8,128], index: 3, kind: input, shape index: {}]
  %s4 = inlined_call_operand.hbm [shape: f32[32,128], index: 4, kind: output, shape index: {0}]
  %s5 = inlined_call_operand.hbm [shape: f32[32,128], index: 5, kind: output, shape index: {1}]
  %s6 = inlined_call_operand.hbm [shape: f32[32,128], index: 6, kind: output, shape index: {2}]
  %7 = xla_tuple %s4, %s5, %s6
  %s8 = sld [smem:[#allocation0]]
  $region69: #{tpu_custom_call.1} parent=0
    _
  %s10 = ssub.s32 1, %s8
  %s11 = scalar_select 0, %s10, %s8
  $region1: #{tpu_custom_call.1} parent=0
    #allocation2 [shape = 'u8[65536]{0}', space=vmem, size = 0x10000, scoped, tag = 'input window, operand 2, single buffered']
    #allocation3 [shape = 's32[2]{0}', space=sflag, size = 0x8, scoped, tag = 'scoped memory for tpu_custom_call.1']
    #allocation4 [shape = 's32[2]{0}', space=sflag, size = 0x8, scoped, tag = 'scoped memory for tpu_custom_call.1']
    #allocation5 [shape = 'u8[16384]{0}', space=vmem, size = 0x4000, scoped, tag = 'output window, operand 0']
    #allocation6 [shape = 'u8[16384]{0}', space=vmem, size = 0x4000, scoped, tag = 'output window, operand 1']
    #allocation7 [shape = 's32[2]{0}', space=sflag, size = 0x8, scoped, tag = 'scoped memory for tpu_custom_call.1']
    #allocation8 [shape = 'u8[16384]{0}', space=vmem, size = 0x4000, scoped, tag = 'output window, operand 2']
    %12 = vsyncpa [#allocation3], 0
    %13 = vsyncpa [#allocation4], 0
    %s14 = scalar_lea.sflag [#allocation4], 1
    %15 = vsyncpa %s14, 0
    %16 = vsyncpa [#allocation7], 0
    %s17 = scalar_lea.sflag [#allocation7], 1
    %18 = vsyncpa %s17, 0
    loop: start=0, step=1, limit=4
    $region2: #{tpu_custom_call.1} parent=1 // loop_pre_header
      _
    $region3: #{tpu_custom_call.1} parent=1 // loop_header
      %s20 = sphi 0, %s24
      %p21 = scmp.ge.s32.totalorder %s20, 4
      %s30 = sphi 0, %s32
      %s33 = sphi 0, %s30
      %s34 = sphi 0, %s33
      %s50 = sphi 0, %s34
      %s56 = sphi 0, %s58
      %s59 = sphi 0, %s56
      %s60 = sphi 0, %s59
      %s76 = sphi 0, %s60
      %s80 = sphi 0, %s80
      %s82 = sphi 0, %s80
      %s83 = sphi 0, %s82
      %s97 = sphi 0, %s83
      %s101 = sphi 0, %s101
      %s103 = sphi 0, %s101
      %s104 = sphi 0, %s103
      %s118 = sphi 0, %s104
      %s124 = sphi 0, %s126
      %s127 = sphi 0, %s124
      %s128 = sphi 0, %s127
      %s144 = sphi 0, %s128
      %s150 = sphi 0, %s152
      %s153 = sphi 0, %s150
      %s154 = sphi 0, %s153
      %s170 = sphi 0, %s154
      %s176 = sphi 0, %s178
      %s179 = sphi 0, %s176
      %s180 = sphi 0, %s179
      %s196 = sphi 0, %s180
    $region4: #{tpu_custom_call.1} parent=1 // loop_header_branch
      %23 = sbr.rel (%p21) target = $region8
    $region5: #{tpu_custom_call.1} parent=1 // loop_body
      %s25 = ssub.s32 %s20, 1
      %s26 = ssub.s32 %s20, 2
      %s27 = sadd.s32 %s20, 1
      %s28 = ssub.s32 %s20, %s27
      %p29 = scmp.eq.s32.totalorder %s28, 0
      %s31 = sadd.s32 %s30, 1
      %s32 = scalar_select %p29, %s30, %s31
      %p35 = pneg %p29
      %p36 = scmp.eq.s32.totalorder %s20, 1
      %p37 = por %p35, %p36
      %p38 = scmp.ne.s32.totalorder %s30, %s33
      %p39 = scmp.eq.s32.totalorder %s20, 0
      %p40 = por %p38, %p39
      %p41 = scmp.ne.s32.totalorder %s30, %s33
      %p42 = scmp.eq.s32.totalorder %s25, 1
      %p43 = por %p41, %p42
      %p44 = scmp.ne.s32.totalorder %s33, %s34
      %p45 = scmp.eq.s32.totalorder %s25, 0
      %p46 = por %p44, %p45
      %p47 = scmp.ne.s32.totalorder %s33, %s34
      %p48 = scmp.eq.s32.totalorder %s26, 1
      %p49 = por %p47, %p48
      %p51 = scmp.ne.s32.totalorder %s34, %s50
      %p52 = scmp.eq.s32.totalorder %s26, 0
      %p53 = por %p51, %p52
      %s54 = ssub.s32 %s20, %s27
      %p55 = scmp.eq.s32.totalorder %s54, 0
      %s57 = sadd.s32 %s56, 1
      %s58 = scalar_select %p55, %s56, %s57
      %p61 = pneg %p55
      %p62 = scmp.eq.s32.totalorder %s20, 1
      %p63 = por %p61, %p62
      %p64 = scmp.ne.s32.totalorder %s56, %s59
      %p65 = scmp.eq.s32.totalorder %s20, 0
      %p66 = por %p64, %p65
      %p67 = scmp.ne.s32.totalorder %s56, %s59
      %p68 = scmp.eq.s32.totalorder %s25, 1
      %p69 = por %p67, %p68
      %p70 = scmp.ne.s32.totalorder %s59, %s60
      %p71 = scmp.eq.s32.totalorder %s25, 0
      %p72 = por %p70, %p71
      %p73 = scmp.ne.s32.totalorder %s59, %s60
      %p74 = scmp.eq.s32.totalorder %s26, 1
      %p75 = por %p73, %p74
      %p77 = scmp.ne.s32.totalorder %s60, %s76
      %p78 = scmp.eq.s32.totalorder %s26, 0
      %p79 = por %p77, %p78
      %s81 = sadd.s32 %s80, 1
      %p84 = scmp.eq.s32.totalorder %s20, 1
      %p85 = scmp.ne.s32.totalorder %s80, %s82
      %p86 = scmp.eq.s32.totalorder %s20, 0
      %p87 = por %p85, %p86
      %p88 = scmp.ne.s32.totalorder %s80, %s82
      %p89 = scmp.eq.s32.totalorder %s25, 1
      %p90 = por %p88, %p89
      %p91 = scmp.ne.s32.totalorder %s82, %s83
      %p92 = scmp.eq.s32.totalorder %s25, 0
      %p93 = por %p91, %p92
      %p94 = scmp.ne.s32.totalorder %s82, %s83
      %p95 = scmp.eq.s32.totalorder %s26, 1
      %p96 = por %p94, %p95
      %p98 = scmp.ne.s32.totalorder %s83, %s97
      %p99 = scmp.eq.s32.totalorder %s26, 0
      %p100 = por %p98, %p99
      %s102 = sadd.s32 %s101, 1
      %p105 = scmp.eq.s32.totalorder %s20, 1
      %p106 = scmp.ne.s32.totalorder %s101, %s103
      %p107 = scmp.eq.s32.totalorder %s20, 0
      %p108 = por %p106, %p107
      %p109 = scmp.ne.s32.totalorder %s101, %s103
      %p110 = scmp.eq.s32.totalorder %s25, 1
      %p111 = por %p109, %p110
      %p112 = scmp.ne.s32.totalorder %s103, %s104
      %p113 = scmp.eq.s32.totalorder %s25, 0
      %p114 = por %p112, %p113
      %p115 = scmp.ne.s32.totalorder %s103, %s104
      %p116 = scmp.eq.s32.totalorder %s26, 1
      %p117 = por %p115, %p116
      %p119 = scmp.ne.s32.totalorder %s104, %s118
      %p120 = scmp.eq.s32.totalorder %s26, 0
      %p121 = por %p119, %p120
      %s122 = ssub.s32 %s20, %s27
      %p123 = scmp.eq.s32.totalorder %s122, 0
      %s125 = sadd.s32 %s124, 1
      %s126 = scalar_select %p123, %s124, %s125
      %p129 = pneg %p123
      %p130 = scmp.eq.s32.totalorder %s20, 1
      %p131 = por %p129, %p130
      %p132 = scmp.ne.s32.totalorder %s124, %s127
      %p133 = scmp.eq.s32.totalorder %s20, 0
      %p134 = por %p132, %p133
      %p135 = scmp.ne.s32.totalorder %s124, %s127
      %p136 = scmp.eq.s32.totalorder %s25, 1
      %p137 = por %p135, %p136
      %p138 = scmp.ne.s32.totalorder %s127, %s128
      %p139 = scmp.eq.s32.totalorder %s25, 0
      %p140 = por %p138, %p139
      %p141 = scmp.ne.s32.totalorder %s127, %s128
      %p142 = scmp.eq.s32.totalorder %s26, 1
      %p143 = por %p141, %p142
      %p145 = scmp.ne.s32.totalorder %s128, %s144
      %p146 = scmp.eq.s32.totalorder %s26, 0
      %p147 = por %p145, %p146
      %s148 = ssub.s32 %s20, %s27
      %p149 = scmp.eq.s32.totalorder %s148, 0
      %s151 = sadd.s32 %s150, 1
      %s152 = scalar_select %p149, %s150, %s151
      %p155 = pneg %p149
      %p156 = scmp.eq.s32.totalorder %s20, 1
      %p157 = por %p155, %p156
      %p158 = scmp.ne.s32.totalorder %s150, %s153
      %p159 = scmp.eq.s32.totalorder %s20, 0
      %p160 = por %p158, %p159
      %p161 = scmp.ne.s32.totalorder %s150, %s153
      %p162 = scmp.eq.s32.totalorder %s25, 1
      %p163 = por %p161, %p162
      %p164 = scmp.ne.s32.totalorder %s153, %s154
      %p165 = scmp.eq.s32.totalorder %s25, 0
      %p166 = por %p164, %p165
      %p167 = scmp.ne.s32.totalorder %s153, %s154
      %p168 = scmp.eq.s32.totalorder %s26, 1
      %p169 = por %p167, %p168
      %p171 = scmp.ne.s32.totalorder %s154, %s170
      %p172 = scmp.eq.s32.totalorder %s26, 0
      %p173 = por %p171, %p172
      %s174 = ssub.s32 %s20, %s27
      %p175 = scmp.eq.s32.totalorder %s174, 0
      %s177 = sadd.s32 %s176, 1
      %s178 = scalar_select %p175, %s176, %s177
      %p181 = pneg %p175
      %p182 = scmp.eq.s32.totalorder %s20, 1
      %p183 = por %p181, %p182
      %p184 = scmp.ne.s32.totalorder %s176, %s179
      %p185 = scmp.eq.s32.totalorder %s20, 0
      %p186 = por %p184, %p185
      %p187 = scmp.ne.s32.totalorder %s176, %s179
      %p188 = scmp.eq.s32.totalorder %s25, 1
      %p189 = por %p187, %p188
      %p190 = scmp.ne.s32.totalorder %s179, %s180
      %p191 = scmp.eq.s32.totalorder %s25, 0
      %p192 = por %p190, %p191
      %p193 = scmp.ne.s32.totalorder %s179, %s180
      %p194 = scmp.eq.s32.totalorder %s26, 1
      %p195 = por %p193, %p194
      %p197 = scmp.ne.s32.totalorder %s180, %s196
      %p198 = scmp.eq.s32.totalorder %s26, 0
      %p199 = por %p197, %p198
      %p200 = scmp.le.s32.totalorder 1, %s20
      %p201 = scmp.lt.s32.totalorder %s20, 3
      %p202 = pnand %p200, %p201
      %p203 = pneg %p202
      // Predicated region
      $region9: #{tpu_custom_call.1} parent=5 // pred_check
        _
      $region10: #{tpu_custom_call.1} parent=5 // pred_check_branch
        %205 = sbr.rel (%p202) target = $region12
      $region11: #{tpu_custom_call.1} parent=5 // pred_region
        %s206 = ssub.s32 %s20, 1
        // Predicated region
        $region13: #{tpu_custom_call.1} parent=11 // pred_check
          %p207 = pneg %p93
        $region14: #{tpu_custom_call.1} parent=11 // pred_check_branch
          %209 = sbr.rel (%p207) target = $region16
        $region15: #{tpu_custom_call.1} parent=11 // pred_region
          %s211 = ssub.s32 2048, 2048
          %212 = vsyncadd [#allocation3], %s211
          %s213 = sshll.u32 [#allocation2], 4
          %s214 = int_to_ptr.vmem [resolvable:$true] %s213
          %219 = dma.hbm_to_vmem [thread:$0]  %s2, 2048, %s214, [#allocation3], 128, 128, 8
        $region16: #{tpu_custom_call.1} parent=11 // pred_fallthru
          _
        // Predicated region
        $region17: #{tpu_custom_call.1} parent=11 // pred_check
          %p220 = pneg %p114
        $region18: #{tpu_custom_call.1} parent=11 // pred_check_branch
          %222 = sbr.rel (%p220) target = $region20
        $region19: #{tpu_custom_call.1} parent=11 // pred_region
          _
        $region20: #{tpu_custom_call.1} parent=11 // pred_fallthru
          _
      $region12: #{tpu_custom_call.1} parent=5 // pred_fallthru
        _
      %p223 = scmp.lt.s32.totalorder %s20, 2
      // Predicated region
      $region21: #{tpu_custom_call.1} parent=5 // pred_check
        %p224 = pneg %p223
      $region22: #{tpu_custom_call.1} parent=5 // pred_check_branch
        %226 = sbr.rel (%p224) target = $region24
      $region23: #{tpu_custom_call.1} parent=5 // pred_region
        // Predicated region
        $region25: #{tpu_custom_call.1} parent=23 // pred_check
          %p227 = pneg %p40
        $region26: #{tpu_custom_call.1} parent=23 // pred_check_branch
          %229 = sbr.rel (%p227) target = $region28
        $region27: #{tpu_custom_call.1} parent=23 // pred_region
          %s230 = smul.u32 2, %s20
          %p231 = scmp.lt.s32.totalorder %s230, 3
          %s232 = scalar_select %p231, %s230, 3
          %s233 = smul.addr %s232, 8
          %s234 = scalar_lea.vmem %s0, %s233
          %s235 = smul.u32 2, %s20
        $region28: #{tpu_custom_call.1} parent=23 // pred_fallthru
          _
        // Predicated region
        $region29: #{tpu_custom_call.1} parent=23 // pred_check
          %p236 = pneg %p66
        $region30: #{tpu_custom_call.1} parent=23 // pred_check_branch
          %238 = sbr.rel (%p236) target = $region32
        $region31: #{tpu_custom_call.1} parent=23 // pred_region
          %s239 = smul.u32 2, %s20
          %p240 = scmp.lt.s32.totalorder %s239, 3
          %s241 = scalar_select %p240, %s239, 3
          %s242 = smul.addr %s241, 8
          %s243 = scalar_lea.vmem %s1, %s242
          %s244 = smul.u32 2, %s20
        $region32: #{tpu_custom_call.1} parent=23 // pred_fallthru
          _
      $region24: #{tpu_custom_call.1} parent=5 // pred_fallthru
        _
      %p245 = scmp.le.s32.totalorder 1, %s20
      %p246 = scmp.lt.s32.totalorder %s20, 3
      %p247 = pnand %p245, %p246
      %p248 = pneg %p247
      // Predicated region
      $region33: #{tpu_custom_call.1} parent=5 // pred_check
        _
      $region34: #{tpu_custom_call.1} parent=5 // pred_check_branch
        %250 = sbr.rel (%p247) target = $region36
      $region35: #{tpu_custom_call.1} parent=5 // pred_region
        %s251 = ssub.s32 %s20, 1
        // Predicated region
        $region37: #{tpu_custom_call.1} parent=35 // pred_check
          %p252 = pneg %p93
        $region38: #{tpu_custom_call.1} parent=35 // pred_check_branch
          %254 = sbr.rel (%p252) target = $region40
        $region39: #{tpu_custom_call.1} parent=35 // pred_region
          %255 = dma.done [#allocation3], 2048
        $region40: #{tpu_custom_call.1} parent=35 // pred_fallthru
          _
        %s256 = smul.u32 2, %s25
        %p257 = scmp.lt.s32.totalorder %s256, 3
        %s258 = scalar_select %p257, %s256, 3
        %s259 = smul.addr %s258, 8
        %s260 = scalar_lea.vmem %s0, %s259
        %p261 = pneg %p46
        %p262 = pneg %p43
        %s263 = smul.u32 2, %s25
        %p264 = scmp.lt.s32.totalorder %s263, 3
        %s265 = scalar_select %p264, %s263, 3
        %s266 = smul.addr %s265, 8
        %s267 = scalar_lea.vmem %s1, %s266
        %p268 = pneg %p72
        %p269 = pneg %p69
        %p270 = pneg %p93
        %p271 = pneg %p90
        %p272 = pneg %p114
        %p273 = pneg %p111
        %p274 = pneg %p140
        %p275 = pneg %p137
        %s276 = sand.u32 %s127, 1
        %s277 = scalar_lea.sflag [#allocation4], %s276
        %s278 = sand.u32 %s127, 1
        %s279 = smul.addr %s278, 16
        %s280 = scalar_lea.vmem [#allocation5], %s279
        %p281 = pneg %p166
        %p282 = pneg %p163
        %s283 = sand.u32 %s25, 1
        %s284 = scalar_lea.sflag [#allocation7], %s283
        %s285 = sand.u32 %s153, 1
        %s286 = smul.addr %s285, 16
        %s287 = scalar_lea.vmem [#allocation6], %s286
        %p288 = pneg %p192
        %p289 = pneg %p189
        %s290 = sand.u32 %s25, 1
        %s291 = scalar_lea.sflag [#allocation7], %s290
        %s292 = sand.u32 %s179, 1
        %s293 = smul.addr %s292, 16
        %s294 = scalar_lea.vmem [#allocation8], %s293
        %s295 = smul.u32 2, %s25
        %p296 = scmp.lt.s32.totalorder %s295, 3
        %s297 = scalar_select %p296, %s295, 3
        %s298 = smul.addr %s297, 8
        %s299 = scalar_lea.vmem %s0, %s298
        %s300 = smul.u32 2, %s25
        %s301 = smul.u32 2, %s25
        %p302 = scmp.lt.s32.totalorder %s301, 3
        %s303 = scalar_select %p302, %s301, 3
        %s304 = smul.addr %s303, 8
        %s305 = scalar_lea.vmem %s1, %s304
        %s306 = smul.u32 2, %s25
        %s307 = smul.u32 2, %s25
        %s308 = smul.u32 2, %s25
        %s309 = smul.u32 2, %s25
        %v310 = vld [vmem:[%s299] sm:$0xff]
        %v311 = vld [vmem:[%s299 + $0x8] sm:$0xff]
        %v312 = vand.u32 2147483647, %v310
        %v313 = vand.u32 2147483647, %v311
        %v314 = vsub.f32 0.0, %v312
        %v315 = vsub.f32 0.0, %v313
        %v316 = vmul.f32 %v314, 1.442695
        %v317 = vpow.pop %v316
        %v318 = vmul.f32 %v315, 1.442695
        %v319 = vpow.pop %v318
        %v320 = vadd.f32 %v317, 1.0
        %v321 = vadd.f32 %v319, 1.0
        %v322 = vrcp.pop %v320
        %v323 = vrcp.pop %v321
        %v324 = vlog2.pop %v320
        %v325 = vmul.f32 %v324, 0.6931472
        %v326 = vlog2.pop %v321
        %v327 = vmul.f32 %v326, 0.6931472
        %v328 = vmax.f32 %v310, 0.0
        %v329 = vmax.f32 %v311, 0.0
        %v330 = vadd.f32 %v328, %v325
        %v331 = vadd.f32 %v329, %v327
        %v332 = vsub.f32 0.0, %v310
        %v333 = vsub.f32 0.0, %v311
        %v334 = vmax.f32 %v332, 0.0
        %v335 = vmax.f32 %v333, 0.0
        %v336 = vadd.f32 %v334, %v325
        %v337 = vadd.f32 %v335, %v327
        %vm338 = vcmp.ge.f32.partialorder %v310, 0.0
        %vm339 = vcmp.ge.f32.partialorder %v311, 0.0
        %v340 = vsel %vm338, 1.0, %v317
        %v341 = vsel %vm339, 1.0, %v319
        %v342 = vmul.f32 %v340, %v322
        %v343 = vmul.f32 %v341, %v323
        %v344 = vsub.f32 1.0, %v342
        %v345 = vsub.f32 1.0, %v343
        %v346 = vmul.f32 %v342, %v342
        %v347 = vmul.f32 %v343, %v343
        %v348 = vmul.f32 %v346, 0.75
        %v349 = vmul.f32 %v347, 0.75
        %v350 = vmul.f32 %v348, %v330
        %v351 = vmul.f32 %v349, %v331
        %v352 = vmul.f32 %v344, %v344
        %v353 = vmul.f32 %v345, %v345
        %v354 = vmul.f32 %v352, 0.25
        %v355 = vmul.f32 %v353, 0.25
        %v356 = vmul.f32 %v354, %v336
        %v357 = vmul.f32 %v355, %v337
        %v358 = vsub.f32 %v356, %v350
        %v359 = vsub.f32 %v357, %v351
        %v360 = vlaneseq
        %v361 = vand.u32 %v360, 127
        %vm362 = vcmp.lt.s32.totalorder %v361, 9
        %v363 = vsel %vm362, %v350, 0.0
        %v364 = vsel %vm362, %v351, 0.0
        %365 = vadd.xlane.f32.xlu0 %v363
        %v366 = vpop.xlane.xlu0 %365
        %367 = vadd.xlane.f32.xlu0 %v364
        %v368 = vpop.xlane.xlu0 %367
        %369 = vst [vmem:[%s294] sm:$0xff] %v366
        %370 = vst [vmem:[%s294 + $0x8] sm:$0xff] %v368
        %v371 = vld [vmem:[#allocation2] sm:$0xff]
        %v372 = vld [vmem:[#allocation2 + $0x8] sm:$0xff]
        %v373 = vld [vmem:[#allocation2 + $0x10] sm:$0xff]
        %v374 = vld [vmem:[#allocation2 + $0x18] sm:$0xff]
        %v375 = vld [vmem:[#allocation2 + $0x20] sm:$0xff]
        %v376 = vld [vmem:[#allocation2 + $0x28] sm:$0xff]
        %v377 = vld [vmem:[#allocation2 + $0x30] sm:$0xff]
        %v378 = vld [vmem:[#allocation2 + $0x38] sm:$0xff]
        %v379 = vld [vmem:[#allocation2 + $0x40] sm:$0xff]
        %v380 = vld [vmem:[#allocation2 + $0x48] sm:$0xff]
        %v381 = vld [vmem:[#allocation2 + $0x50] sm:$0xff]
        %v382 = vld [vmem:[#allocation2 + $0x58] sm:$0xff]
        %v383 = vld [vmem:[#allocation2 + $0x60] sm:$0xff]
        %v384 = vld [vmem:[#allocation2 + $0x68] sm:$0xff]
        %v385 = vld [vmem:[#allocation2 + $0x70] sm:$0xff]
        %v386 = vld [vmem:[#allocation2 + $0x78] sm:$0xff]
        %387 = vmatprep.subr.mxu0 0.0
        %388 = vmatpush1.msra.mxu0 %v371
        %389 = vmatprep.subr.mxu0 0.0
        %390 = vmatpush1.msra.mxu0 %v372
        %391 = vmatprep.subr.mxu0 0.0
        %392 = vmatpush1.msra.mxu0 %v373
        %393 = vmatprep.subr.mxu0 0.0
        %394 = vmatpush1.msra.mxu0 %v374
        %395 = vmatprep.subr.mxu0 0.0
        %396 = vmatpush1.msra.mxu0 %v375
        %397 = vmatprep.subr.mxu0 0.0
        %398 = vmatpush1.msra.mxu0 %v376
        %399 = vmatprep.subr.mxu0 0.0
        %400 = vmatpush1.msra.mxu0 %v377
        %401 = vmatprep.subr.mxu0 0.0
        %402 = vmatpush1.msra.mxu0 %v378
        %403 = vmatprep.subr.mxu0 0.0
        %404 = vmatpush1.msra.mxu0 %v379
        %405 = vmatprep.subr.mxu0 0.0
        %406 = vmatpush1.msra.mxu0 %v380
        %407 = vmatprep.subr.mxu0 0.0
        %408 = vmatpush1.msra.mxu0 %v381
        %409 = vmatprep.subr.mxu0 0.0
        %410 = vmatpush1.msra.mxu0 %v382
        %411 = vmatprep.subr.mxu0 0.0
        %412 = vmatpush1.msra.mxu0 %v383
        %413 = vmatprep.subr.mxu0 0.0
        %414 = vmatpush1.msra.mxu0 %v384
        %415 = vmatprep.subr.mxu0 0.0
        %416 = vmatpush1.msra.mxu0 %v385
        %417 = vmatprep.subr.mxu0 0.0
        %418 = vmatpush1.msra.mxu0 %v386
        %419 = vmatprep.subr.mxu0 0.0
        %420 = vmatpush1.msra.mxu0 0.0
        %421 = vmatprep.subr.mxu0 0.0
        %422 = vmatpush1.msra.mxu0 0.0
        %423 = vmatprep.subr.mxu0 0.0
        %424 = vmatpush1.msra.mxu0 0.0
        %425 = vmatprep.subr.mxu0 0.0
        %426 = vmatpush1.msra.mxu0 0.0
        %427 = vmatprep.subr.mxu0 0.0
        %428 = vmatpush1.msra.mxu0 0.0
        %429 = vmatprep.subr.mxu0 0.0
        %430 = vmatpush1.msra.mxu0 0.0
        %431 = vmatprep.subr.mxu0 0.0
        %432 = vmatpush1.msra.mxu0 0.0
        %433 = vmatprep.subr.mxu0 0.0
        %434 = vmatpush1.msra.mxu0 0.0
        %435 = vmatprep.subr.mxu0 0.0
        %436 = vmatpush1.msra.mxu0 0.0
        %437 = vmatprep.subr.mxu0 0.0
        %438 = vmatpush1.msra.mxu0 0.0
        %439 = vmatprep.subr.mxu0 0.0
        %440 = vmatpush1.msra.mxu0 0.0
        %441 = vmatprep.subr.mxu0 0.0
        %442 = vmatpush1.msra.mxu0 0.0
        %443 = vmatprep.subr.mxu0 0.0
        %444 = vmatpush1.msra.mxu0 0.0
        %445 = vmatprep.subr.mxu0 0.0
        %446 = vmatpush1.msra.mxu0 0.0
        %447 = vmatprep.subr.mxu0 0.0
        %448 = vmatpush1.msra.mxu0 0.0
        %449 = vmatprep.subr.mxu0 0.0
        %450 = vmatpush1.msra.mxu0 0.0
        %451 = vmatprep.mubr.f32.mxu0 0.0
        %452 = vmatmul.mubr.f32.gmra.mrb[0].mxu0 %v358
        %v453 = vpop.f32.mrb[0].mxu0
        %v454 = vadd.f32 0.0, %v453
        %v455 = vpop.f32.mrb[0].mxu0
        %456 = vmatprep.mubr.f32.mxu0 0.0
        %457 = vmatmul.mubr.f32.gmra.mrb[0].mxu0 %v359
        %v458 = vpop.f32.mrb[0].mxu0
        %v459 = vadd.f32 0.0, %v458
        %v460 = vpop.f32.mrb[0].mxu0
        %461 = vdwg.mxu0
        %462 = vst [vmem:[%s287] sm:$0xff] %v454
        %463 = vst [vmem:[%s287 + $0x8] sm:$0xff] %v459
        %v464 = vld [vmem:[%s305] sm:$0xff]
        %v465 = vld [vmem:[%s305 + $0x8] sm:$0xff]
        %v466 = vld [vmem:[%s3] sm:$0xff]
        %468 = vset.pattern.permute.xlu0 0
        %469 = vperm.xlu0 %468, %v464
        %v470 = vpop.permute.xlu0 %469
        %473 = vset.pattern.permute.xlu0 0
        %474 = vperm.xlu0 %473, %v465
        %v475 = vpop.permute.xlu0 %474
        %v477 = vlaneseq
        %v478 = vshrl.u32 %v477, 7
        %v479 = vsub.s32 0, %v478
        %v480 = vrot.slane %v466, %v479
        %v481 = vsub.f32 %v470, %v480
        %v482 = vsub.f32 %v475, %v480
        %v483 = vand.u32 2147483647, %v481
        %v484 = vand.u32 2147483647, %v482
        %485 = vset.pattern.permute.xlu0 1
        %486 = vperm.xlu0 %485, %v464
        %v487 = vpop.permute.xlu0 %486
        %489 = vset.pattern.permute.xlu0 1
        %490 = vperm.xlu0 %489, %v465
        %v491 = vpop.permute.xlu0 %490
        %v493 = vlaneseq
        %v494 = vshrl.u32 %v493, 7
        %v495 = vsub.s32 1, %v494
        %v496 = vrot.slane %v466, %v495
        %v497 = vsub.f32 %v487, %v496
        %v498 = vsub.f32 %v491, %v496
        %v499 = vand.u32 2147483647, %v497
        %v500 = vand.u32 2147483647, %v498
        %v501 = vadd.f32 %v483, %v499
        %v502 = vadd.f32 %v484, %v500
        %503 = vset.pattern.permute.xlu0 2
        %504 = vperm.xlu0 %503, %v464
        %v505 = vpop.permute.xlu0 %504
        %507 = vset.pattern.permute.xlu0 2
        %508 = vperm.xlu0 %507, %v465
        %v509 = vpop.permute.xlu0 %508
        %v511 = vlaneseq
        %v512 = vshrl.u32 %v511, 7
        %v513 = vsub.s32 2, %v512
        %v514 = vrot.slane %v466, %v513
        %v515 = vsub.f32 %v505, %v514
        %v516 = vsub.f32 %v509, %v514
        %v517 = vand.u32 2147483647, %v515
        %v518 = vand.u32 2147483647, %v516
        %v519 = vadd.f32 %v501, %v517
        %v520 = vadd.f32 %v502, %v518
        %521 = vset.pattern.permute.xlu0 3
        %522 = vperm.xlu0 %521, %v464
        %v523 = vpop.permute.xlu0 %522
        %525 = vset.pattern.permute.xlu0 3
        %526 = vperm.xlu0 %525, %v465
        %v527 = vpop.permute.xlu0 %526
        %v529 = vlaneseq
        %v530 = vshrl.u32 %v529, 7
        %v531 = vsub.s32 3, %v530
        %v532 = vrot.slane %v466, %v531
        %v533 = vsub.f32 %v523, %v532
        %v534 = vsub.f32 %v527, %v532
        %v535 = vand.u32 2147483647, %v533
        %v536 = vand.u32 2147483647, %v534
        %v537 = vadd.f32 %v519, %v535
        %v538 = vadd.f32 %v520, %v536
        %539 = vrot.lane.b32.xlu0 %v464, 127
        %v540 = vpop.permute.xlu0 %539
        %541 = vrot.lane.b32.xlu0 %v465, 127
        %v542 = vpop.permute.xlu0 %541
        %v545 = vmul.f32 %v464, %v540
        %v546 = vmul.f32 %v465, %v542
        %v548 = vrot.slane %v466, 1
        %v550 = vmul.f32 %v466, %v548
        %551 = vset.pattern.permute.xlu0 6
        %552 = vperm.xlu0 %551, %v464
        %v553 = vpop.permute.xlu0 %552
        %555 = vset.pattern.permute.xlu0 6
        %556 = vperm.xlu0 %555, %v465
        %v557 = vpop.permute.xlu0 %556
        %v559 = vlaneseq
        %v560 = vshrl.u32 %v559, 7
        %v561 = vsub.s32 6, %v560
        %v562 = vrot.slane %v466, %v561
        %v563 = vmin.f32 %v553, %v562
        %v564 = vmin.f32 %v557, %v562
        %565 = vset.pattern.permute.xlu0 4
        %566 = vperm.xlu0 %565, %v464
        %v567 = vpop.permute.xlu0 %566
        %569 = vset.pattern.permute.xlu0 4
        %570 = vperm.xlu0 %569, %v465
        %v571 = vpop.permute.xlu0 %570
        %v573 = vlaneseq
        %v574 = vshrl.u32 %v573, 7
        %v575 = vsub.s32 4, %v574
        %v576 = vrot.slane %v466, %v575
        %v577 = vmax.f32 %v567, %v576
        %v578 = vmax.f32 %v571, %v576
        %v579 = vsub.f32 %v563, %v577
        %v580 = vsub.f32 %v564, %v578
        %v581 = vmax.f32 %v579, 0.0
        %v582 = vmax.f32 %v580, 0.0
        %583 = vset.pattern.permute.xlu0 7
        %584 = vperm.xlu0 %583, %v464
        %v585 = vpop.permute.xlu0 %584
        %587 = vset.pattern.permute.xlu0 7
        %588 = vperm.xlu0 %587, %v465
        %v589 = vpop.permute.xlu0 %588
        %v591 = vlaneseq
        %v592 = vshrl.u32 %v591, 7
        %v593 = vsub.s32 7, %v592
        %v594 = vrot.slane %v466, %v593
        %v595 = vmin.f32 %v585, %v594
        %v596 = vmin.f32 %v589, %v594
        %597 = vset.pattern.permute.xlu0 5
        %598 = vperm.xlu0 %597, %v464
        %v599 = vpop.permute.xlu0 %598
        %601 = vset.pattern.permute.xlu0 5
        %602 = vperm.xlu0 %601, %v465
        %v603 = vpop.permute.xlu0 %602
        %v605 = vlaneseq
        %v606 = vshrl.u32 %v605, 7
        %v607 = vsub.s32 5, %v606
        %v608 = vrot.slane %v466, %v607
        %v609 = vmax.f32 %v599, %v608
        %v610 = vmax.f32 %v603, %v608
        %v611 = vsub.f32 %v595, %v609
        %v612 = vsub.f32 %v596, %v610
        %v613 = vmax.f32 %v611, 0.0
        %v614 = vmax.f32 %v612, 0.0
        %v615 = vmul.f32 %v581, %v613
        %v616 = vmul.f32 %v582, %v614
        %618 = vset.pattern.permute.xlu0 2
        %619 = vperm.xlu0 %618, %v545
        %v620 = vpop.permute.xlu0 %619
        %623 = vset.pattern.permute.xlu0 2
        %624 = vperm.xlu0 %623, %v546
        %v625 = vpop.permute.xlu0 %624
        %v627 = vlaneseq
        %v628 = vshrl.u32 %v627, 7
        %v629 = vsub.s32 2, %v628
        %v630 = vrot.slane %v550, %v629
        %v631 = vadd.f32 %v620, %v630
        %v632 = vadd.f32 %v625, %v630
        %v633 = vsub.f32 %v631, %v615
        %v634 = vsub.f32 %v632, %v616
        %v635 = vadd.f32 %v633, 1e-07
        %v636 = vadd.f32 %v634, 1e-07
        %v637 = vrcp.pop %v635
        %v638 = vrcp.pop %v636
        %v639 = vmul.f32 %v615, %v637
        %v640 = vmul.f32 %v616, %v638
        %v641 = vmax.f32 %v553, %v562
        %v642 = vmax.f32 %v557, %v562
        %v643 = vmin.f32 %v567, %v576
        %v644 = vmin.f32 %v571, %v576
        %v645 = vsub.f32 %v641, %v643
        %v646 = vsub.f32 %v642, %v644
        %v647 = vmax.f32 %v585, %v594
        %v648 = vmax.f32 %v589, %v594
        %v649 = vmin.f32 %v599, %v608
        %v650 = vmin.f32 %v603, %v608
        %v651 = vsub.f32 %v647, %v649
        %v652 = vsub.f32 %v648, %v650
        %v653 = vmul.f32 %v645, %v651
        %v654 = vmul.f32 %v646, %v652
        %v655 = vsub.f32 %v653, %v633
        %v656 = vsub.f32 %v654, %v634
        %v657 = vadd.f32 %v653, 1e-07
        %v658 = vadd.f32 %v654, 1e-07
        %v659 = vrcp.pop %v657
        %v660 = vrcp.pop %v658
        %v661 = vmul.f32 %v655, %v659
        %v662 = vmul.f32 %v656, %v660
        %v663 = vsub.f32 %v639, %v661
        %v664 = vsub.f32 %v640, %v662
        %v665 = vmul.f32 %v537, 5.0
        %v666 = vmul.f32 %v538, 5.0
        %v667 = vmul.f32 %v454, 2.0
        %v668 = vmul.f32 %v459, 2.0
        %v669 = vadd.f32 %v665, %v667
        %v670 = vadd.f32 %v666, %v668
        %v671 = vsub.f32 0.0, %v663
        %v672 = vsub.f32 0.0, %v664
        %v673 = vmul.f32 %v671, 2.0
        %v674 = vmul.f32 %v672, 2.0
        %v675 = vadd.f32 %v669, %v673
        %v676 = vadd.f32 %v670, %v674
        %677 = vst [vmem:[%s280] sm:$0xff] %v675
        %678 = vst [vmem:[%s280 + $0x8] sm:$0xff] %v676
        %s679 = sand.u32 %s127, 1
        %s680 = scalar_lea.sflag [#allocation4], %s679
        %s681 = sand.u32 %s127, 1
        %s682 = smul.addr %s681, 16
        %s683 = scalar_lea.vmem [#allocation5], %s682
        %s684 = sand.u32 %s25, 1
        %s685 = scalar_lea.sflag [#allocation7], %s684
        %s686 = sand.u32 %s153, 1
        %s687 = smul.addr %s686, 16
        %s688 = scalar_lea.vmem [#allocation6], %s687
        %s689 = sand.u32 %s25, 1
        %s690 = scalar_lea.sflag [#allocation7], %s689
        %s691 = sand.u32 %s179, 1
        %s692 = smul.addr %s691, 16
        %s693 = scalar_lea.vmem [#allocation8], %s692
        // Predicated region
        $region41: #{tpu_custom_call.1} parent=35 // pred_check
          %p694 = pneg %p137
        $region42: #{tpu_custom_call.1} parent=35 // pred_check_branch
          %696 = sbr.rel (%p694) target = $region44
        $region43: #{tpu_custom_call.1} parent=35 // pred_region
          %s697 = smul.u32 2, %s25
          %s699 = ssub.s32 256, 256
          %700 = vsyncadd %s680, %s699
          %s701 = smul.addr %s697, 128
          %s702 = scalar_lea.hbm %s4, %s701
          %s703 = sshll.u32 %s683, 4
          %s704 = int_to_ptr.vmem [resolvable:$true] %s703
          %709 = dma.vmem_to_hbm [thread:$0]  %s704, 256, %s702, %s680, 128, 128, 8
        $region44: #{tpu_custom_call.1} parent=35 // pred_fallthru
          _
        // Predicated region
        $region45: #{tpu_custom_call.1} parent=35 // pred_check
          %p710 = pneg %p163
        $region46: #{tpu_custom_call.1} parent=35 // pred_check_branch
          %712 = sbr.rel (%p710) target = $region48
        $region47: #{tpu_custom_call.1} parent=35 // pred_region
          %s713 = smul.u32 2, %s25
          %s715 = ssub.s32 256, 256
          %716 = vsyncadd %s685, %s715
          %s717 = smul.addr %s713, 128
          %s718 = scalar_lea.hbm %s5, %s717
          %s719 = sshll.u32 %s688, 4
          %s720 = int_to_ptr.vmem [resolvable:$true] %s719
          %725 = dma.vmem_to_hbm [thread:$0]  %s720, 256, %s718, %s685, 128, 128, 8
        $region48: #{tpu_custom_call.1} parent=35 // pred_fallthru
          _
        // Predicated region
        $region49: #{tpu_custom_call.1} parent=35 // pred_check
          %p726 = pneg %p189
        $region50: #{tpu_custom_call.1} parent=35 // pred_check_branch
          %728 = sbr.rel (%p726) target = $region52
        $region51: #{tpu_custom_call.1} parent=35 // pred_region
          %s729 = smul.u32 2, %s25
          %s731 = ssub.s32 256, 256
          %732 = vsyncadd %s690, %s731
          %s733 = smul.addr %s729, 128
          %s734 = scalar_lea.hbm %s6, %s733
          %s735 = sshll.u32 %s693, 4
          %s736 = int_to_ptr.vmem [resolvable:$true] %s735
          %741 = dma.vmem_to_hbm [thread:$0]  %s736, 256, %s734, %s690, 128, 128, 8
        $region52: #{tpu_custom_call.1} parent=35 // pred_fallthru
          _
      $region36: #{tpu_custom_call.1} parent=5 // pred_fallthru
        _
      %p742 = scmp.le.s32.totalorder 2, %s20
      // Predicated region
      $region53: #{tpu_custom_call.1} parent=5 // pred_check
        %p743 = pneg %p742
      $region54: #{tpu_custom_call.1} parent=5 // pred_check_branch
        %745 = sbr.rel (%p743) target = $region56
      $region55: #{tpu_custom_call.1} parent=5 // pred_region
        %s746 = ssub.s32 %s20, 2
        // Predicated region
        $region57: #{tpu_custom_call.1} parent=55 // pred_check
          %p747 = pneg %p143
        $region58: #{tpu_custom_call.1} parent=55 // pred_check_branch
          %749 = sbr.rel (%p747) target = $region60
        $region59: #{tpu_custom_call.1} parent=55 // pred_region
          %s750 = sand.u32 %s128, 1
          %s751 = scalar_lea.sflag [#allocation4], %s750
          %s752 = sand.u32 %s128, 1
          %s753 = smul.addr %s752, 16
          %s754 = scalar_lea.vmem [#allocation5], %s753
          %755 = dma.done %s751, 256
        $region60: #{tpu_custom_call.1} parent=55 // pred_fallthru
          _
        // Predicated region
        $region61: #{tpu_custom_call.1} parent=55 // pred_check
          %p756 = pneg %p169
        $region62: #{tpu_custom_call.1} parent=55 // pred_check_branch
          %758 = sbr.rel (%p756) target = $region64
        $region63: #{tpu_custom_call.1} parent=55 // pred_region
          %s759 = sand.u32 %s26, 1
          %s760 = scalar_lea.sflag [#allocation7], %s759
          %s761 = sand.u32 %s154, 1
          %s762 = smul.addr %s761, 16
          %s763 = scalar_lea.vmem [#allocation6], %s762
          %764 = dma.done %s760, 256
        $region64: #{tpu_custom_call.1} parent=55 // pred_fallthru
          _
        // Predicated region
        $region65: #{tpu_custom_call.1} parent=55 // pred_check
          %p765 = pneg %p195
        $region66: #{tpu_custom_call.1} parent=55 // pred_check_branch
          %767 = sbr.rel (%p765) target = $region68
        $region67: #{tpu_custom_call.1} parent=55 // pred_region
          %s768 = sand.u32 %s26, 1
          %s769 = scalar_lea.sflag [#allocation7], %s768
          %s770 = sand.u32 %s180, 1
          %s771 = smul.addr %s770, 16
          %s772 = scalar_lea.vmem [#allocation8], %s771
          %773 = dma.done %s769, 256
        $region68: #{tpu_custom_call.1} parent=55 // pred_fallthru
          _
      $region56: #{tpu_custom_call.1} parent=5 // pred_fallthru
        _
    $region6: #{tpu_custom_call.1} parent=1 // loop_footer
      %s24 = sadd.s32 1, %s20
    $region7: #{tpu_custom_call.1} parent=1 // loop_footer_branch
      %19 = sbr.rel target = $region3
    $region8: #{tpu_custom_call.1} parent=1 // loop_exit
      _
    %774 = vsyncpa [#allocation3], 1
    %s775 = scalar_lea.sflag [#allocation3], 1
    %776 = vsyncpa %s775, 1
    %777 = vsyncpa [#allocation4], 1
    %s778 = scalar_lea.sflag [#allocation4], 1
    %779 = vsyncpa %s778, 1
    %780 = vsyncpa [#allocation7], 1
    %s781 = scalar_lea.sflag [#allocation7], 1
    %782 = vsyncpa %s781, 1

</llo_original>
